<compile_context>
chip_gen: v5e
topology: v5e:2x2
jax: 0.10.0
libtpu: 0.0.40
codegen_flags: <defaults>
</compile_context>

<pallas_src>
import functools

import jax
import jax.numpy as jnp
from jax import lax
from jax.experimental import pallas as pl
from jax.experimental.pallas import tpu as pltpu


def _round_up(x, m):
    return (x + m - 1) // m * m


def linear_embed_kernel(x_ref, w_ref, b_ref, o_ref):
    """One (split, n, k) tile of  out = x[B, K] @ w[K, N]  (+ bias on split 0)."""
    s = pl.program_id(0)          # reduction-split index (partial sums)
    k = pl.program_id(2)          # K-tile index within this split

    @pl.when(k == 0)
    def _zero():
        o_ref[...] = jnp.zeros_like(o_ref)

    @pl.when((k == 0) & (s == 0))
    def _bias():
        # Only the first partial sum carries the bias (added exactly once).
        o_ref[...] = jnp.broadcast_to(b_ref[...], o_ref.shape).astype(jnp.float32)

    # Natural (tk, tn) weight layout: bf16 x bf16 MXU matmul, f32 accumulation
    # directly into the resident output block.
    o_ref[...] += jnp.dot(x_ref[...], w_ref[...],
                          preferred_element_type=jnp.float32)


def prepare_linear_embed_params(weight, bias):
    """One-time parameter prep (outside the per-call hot path).

    weight : (N, K) float32  (torch nn.Linear layout)
    bias   : (N,)
    Returns:
      w_kn  : (Kp, Np) bfloat16 -- transposed + zero-padded to multiples of 128
      b_row : (1, Np)  float32  -- zero-padded bias row
    """
    N, K = weight.shape
    Kp = _round_up(K, 128)
    Np = _round_up(N, 128)
    # bf16 weight streaming halves HBM traffic in this weight-bound regime;
    # the kernel still accumulates in f32.
    # TODO(synk): on v7x the MXU also takes fp8; an fp8 weight path would halve
    # weight bytes again at some accuracy cost.
    w_kn = weight.astype(jnp.bfloat16).T                       # (K, N)
    w_kn = jnp.pad(w_kn, ((0, Kp - K), (0, Np - N)))
    b_row = jnp.pad(bias.astype(jnp.float32), (0, Np - N)).reshape(1, Np)
    return w_kn, b_row


def _vmem_capacity_bytes():
    try:
        return int(pltpu.get_tpu_info().vmem_capacity_bytes)
    except Exception:
        return 64 * 1024 * 1024   # conservative fallback (v7x-sized)


def _choose_tn(Np):
    for cand in (512, 256, 128):
        if Np % cand == 0:
            return cand
    return Np   # unreachable: Np is always a multiple of 128


def _choose_tk(Kp, Bp, tn, stream_budget_bytes):
    """Largest multiple-of-128 divisor of Kp whose double-buffered bf16
    x + weight streams fit the budget (so no per-call K padding is needed)."""
    per_col = 2 * (Bp + tn) * 2          # 2 buffers x (x col + w col) x 2 B/elem
    tk_cap = max(128, (stream_budget_bytes // per_col) // 128 * 128)
    m = Kp // 128
    best = 1
    d = 1
    while d * d <= m:
        if m % d == 0:
            for c in (d, m // d):
                if c * 128 <= tk_cap and c > best:
                    best = c
        d += 1
    return best * 128


@functools.partial(jax.jit, static_argnames=("n_out",))
def linear_embed(x_nchw, w_kn, b_row, *, n_out):
    """LinearEmbed.forward: x.view(B, -1) @ weight.T + bias.

    x_nchw : (B, C, H, W) float32
    w_kn   : (Kp, Np) bf16 prepared weight (see prepare_linear_embed_params)
    b_row  : (1, Np) f32 prepared bias
    n_out  : original N (static), used to slice padding off the output.
    Returns (B, n_out) float32.
    """
    B = x_nchw.shape[0]
    x2d = x_nchw.reshape(B, -1)                 # same flattening as torch .view
    K = x2d.shape[1]
    Kp, Np = w_kn.shape
    if Kp != _round_up(K, 128):
        raise ValueError(
            f"prepared weight K ({Kp}) does not match input features ({K})")

    # Pad batch to full sublanes and K to the prepared (128-aligned) extent;
    # x is tiny, so this per-call padding is negligible (unlike the weight).
    Bp = _round_up(max(B, 8), 8)
    x2d = jnp.pad(x2d.astype(jnp.bfloat16), ((0, Bp - B), (0, Kp - K)))

    # --- per-generation tile / VMEM sizing --------------------------------
    phys_vmem = _vmem_capacity_bytes()
    stream_budget = min((3 * phys_vmem) // 4, 64 * 1024 * 1024)
    tn = _choose_tn(Np)
    tk = _choose_tk(Kp, Bp, tn, stream_budget)

    n_tiles = Np // tn
    k_tiles = Kp // tk
    # When the parallel N axis collapses to one tile but K has >= 2 (even)
    # tiles, split the reduction into two partial sums so v7x's second
    # TensorCore has work; partial sums are added after the call.
    n_splits = 2 if (n_tiles == 1 and k_tiles >= 2 and k_tiles % 2 == 0) else 1
    k_per_split = k_tiles // n_splits

    tile_bytes = (2 * (Bp * tk * 2 + tk * tn * 2)   # double-buffered bf16 x + w
                  + 2 * (Bp * tn * 4)               # double-buffered f32 out block
                  + 2 * (tn * 4))                   # bias block
    vmem_limit = int(min(phys_vmem,
                         max(32 * 1024 * 1024, tile_bytes + 4 * 1024 * 1024)))

    # NOTE: x's index_map ignores n, so x is re-streamed per N tile; at these
    # batch sizes that is noise compared with the weight stream.
    out = pl.pallas_call(
        linear_embed_kernel,
        out_shape=jax.ShapeDtypeStruct((n_splits, Bp, Np), jnp.float32),
        grid_spec=pltpu.PrefetchScalarGridSpec(
            num_scalar_prefetch=0,
            grid=(n_splits, n_tiles, k_per_split),   # reduction axis last
            in_specs=[
                pl.BlockSpec((Bp, tk),
                             lambda s, n, k: (0, s * k_per_split + k)),  # x tile
                pl.BlockSpec((tk, tn),
                             lambda s, n, k: (s * k_per_split + k, n)),  # weight tile
                pl.BlockSpec((1, tn), lambda s, n, k: (0, n)),           # bias
            ],
            out_specs=pl.BlockSpec((None, Bp, tn),
                                   lambda s, n, k: (s, 0, n)),  # resident accumulator
        ),
        compiler_params=pltpu.CompilerParams(
            dimension_semantics=("parallel", "parallel", "arbitrary"),
            vmem_limit_bytes=vmem_limit,
        ),
    )(x2d, w_kn, b_row)

    out = out.sum(axis=0) if n_splits > 1 else out[0]
    return out[:B, :n_out]


if __name__ == "__main__":
    # Small shapes consistent with the module's forward:
    # x: (B, C, H, W) -> dim_in = C*H*W = 4*16*16 = 1024, dim_out = 64.
    B, C, H, W = 2, 4, 16, 16
    dim_in = C * H * W
    dim_out = 64

    key = jax.random.PRNGKey(0)
    kx, kw, kb = jax.random.split(key, 3)

    x = jax.random.normal(kx, (B, C, H, W), dtype=jnp.float32)
    # Deterministic synthetic nn.Linear parameters (torch shape conventions).
    bound = 1.0 / (dim_in ** 0.5)
    weight = jax.random.uniform(
        kw, (dim_out, dim_in), minval=-bound, maxval=bound, dtype=jnp.float32)
    bias = jax.random.uniform(
        kb, (dim_out,), minval=-bound, maxval=bound, dtype=jnp.float32)

    # One-time parameter prep (amortized across calls, not in the jitted path).
    w_kn, b_row = prepare_linear_embed_params(weight, bias)

    out = linear_embed(x, w_kn, b_row, n_out=dim_out)
    out = jax.block_until_ready(out)
    assert out.shape == (B, dim_out)

    # Reference mirroring the kernel's bf16 streaming (f32-accurate dot) ...
    xq = x.reshape(B, -1).astype(jnp.bfloat16).astype(jnp.float32)
    wq = weight.astype(jnp.bfloat16).astype(jnp.float32)
    ref_q = jnp.dot(xq, wq.T, precision=lax.Precision.HIGHEST) + bias
    assert jnp.allclose(out, ref_q, atol=2e-4, rtol=2e-4), \
        float(jnp.max(jnp.abs(out - ref_q)))

    # ... and the exact f32 torch semantics (loose tolerance for bf16 streams).
    ref = jnp.dot(x.reshape(B, -1), weight.T,
                  precision=lax.Precision.HIGHEST) + bias
    assert jnp.allclose(out, ref, atol=3e-2, rtol=3e-2)

    print("KERNEL_OK")
</pallas_src>

<mosaic_0001>
module attributes {stable_mosaic.version = 11 : i64} {
  func.func @linear_embed_kernel(%arg0: i32, %arg1: i32, %arg2: i32, %arg3: memref<8x1024xbf16, #tpu.memory_space<vmem>>, %arg4: memref<1024x128xbf16, #tpu.memory_space<vmem>>, %arg5: memref<1x128xf32, #tpu.memory_space<vmem>>, %arg6: memref<1x8x128xf32, #tpu.memory_space<vmem>>) attributes {dimension_semantics = [#tpu.dimension_semantics<parallel>, #tpu.dimension_semantics<parallel>, #tpu.dimension_semantics<arbitrary>], iteration_bounds = array<i64: 1, 1, 1>, scalar_prefetch = 0 : i64, scratch_operands = 0 : i64, tpu.core_type = #tpu.core_type<tc>, window_params = [{transform_indices = @transform_0, window_bounds = array<i64: 8, 1024>}, {transform_indices = @transform_1, window_bounds = array<i64: 1024, 128>}, {transform_indices = @transform_2, window_bounds = array<i64: 1, 128>}, {transform_indices = @transform_3, window_bounds = array<i64: 1, 8, 128>}]} {
    %c0_i32 = arith.constant 0 : i32
    %0 = arith.cmpi eq, %arg2, %c0_i32 : i32
    %1 = arith.extui %0 : i1 to i32
    %c0_i32_0 = arith.constant 0 : i32
    %2 = arith.cmpi ne, %1, %c0_i32_0 : i32
    scf.if %2 {
      %cst_13 = arith.constant 0.000000e+00 : f32
      %17 = vector.broadcast %cst_13 : f32 to vector<8x128xf32>
      %c0_14 = arith.constant 0 : index
      %c0_15 = arith.constant 0 : index
      %c0_16 = arith.constant 0 : index
      %18 = vector.load %arg6[%c0_14, %c0_15, %c0_16] : memref<1x8x128xf32, #tpu.memory_space<vmem>>, vector<1x8x128xf32>
      %19 = vector.shape_cast %18 : vector<1x8x128xf32> to vector<8x128xf32>
      %20 = vector.shape_cast %17 : vector<8x128xf32> to vector<1x8x128xf32>
      tpu.vector_store %arg6[%c0_14, %c0_15, %c0_16], %20 {strides = array<i32>} : memref<1x8x128xf32, #tpu.memory_space<vmem>>, vector<1x8x128xf32>,
    } else {
    }
    %c0_i32_1 = arith.constant 0 : i32
    %3 = arith.cmpi eq, %arg2, %c0_i32_1 : i32
    %c0_i32_2 = arith.constant 0 : i32
    %4 = arith.cmpi eq, %arg0, %c0_i32_2 : i32
    %5 = arith.andi %3, %4 : i1
    %6 = arith.extui %5 : i1 to i32
    %c0_i32_3 = arith.constant 0 : i32
    %7 = arith.cmpi ne, %6, %c0_i32_3 : i32
    scf.if %7 {
      %c0_13 = arith.constant 0 : index
      %c0_14 = arith.constant 0 : index
      %17 = vector.load %arg5[%c0_13, %c0_14] : memref<1x128xf32, #tpu.memory_space<vmem>>, vector<1x128xf32>
      %18 = vector.shape_cast %17 : vector<1x128xf32> to vector<1x128xf32>
      %19 = vector.broadcast %18 : vector<1x128xf32> to vector<8x128xf32>
      %c0_15 = arith.constant 0 : index
      %c0_16 = arith.constant 0 : index
      %c0_17 = arith.constant 0 : index
      %20 = vector.load %arg6[%c0_15, %c0_16, %c0_17] : memref<1x8x128xf32, #tpu.memory_space<vmem>>, vector<1x8x128xf32>
      %21 = vector.shape_cast %20 : vector<1x8x128xf32> to vector<8x128xf32>
      %22 = vector.shape_cast %19 : vector<8x128xf32> to vector<1x8x128xf32>
      tpu.vector_store %arg6[%c0_15, %c0_16, %c0_17], %22 {strides = array<i32>} : memref<1x8x128xf32, #tpu.memory_space<vmem>>, vector<1x8x128xf32>,
    } else {
    }
    %c0 = arith.constant 0 : index
    %c0_4 = arith.constant 0 : index
    %c0_5 = arith.constant 0 : index
    %8 = vector.load %arg6[%c0, %c0_4, %c0_5] : memref<1x8x128xf32, #tpu.memory_space<vmem>>, vector<1x8x128xf32>
    %9 = vector.shape_cast %8 : vector<1x8x128xf32> to vector<8x128xf32>
    %c0_6 = arith.constant 0 : index
    %c0_7 = arith.constant 0 : index
    %10 = vector.load %arg3[%c0_6, %c0_7] : memref<8x1024xbf16, #tpu.memory_space<vmem>>, vector<8x1024xbf16>
    %c0_8 = arith.constant 0 : index
    %c0_9 = arith.constant 0 : index
    %11 = vector.load %arg4[%c0_8, %c0_9] : memref<1024x128xbf16, #tpu.memory_space<vmem>>, vector<1024x128xbf16>
    %cst = arith.constant dense<0.000000e+00> : vector<8x128xf32>
    %12 = tpu.matmul %10, %11, %cst {dimension_numbers = #tpu.dot_dimension_numbers<[1], [0], [0], [1], [0, 0, 1, 1], [], []>} : vector<8x1024xbf16>, vector<1024x128xbf16>, vector<8x128xf32> -> vector<8x128xf32>
    %13 = arith.addf %9, %12 : vector<8x128xf32>
    %c0_10 = arith.constant 0 : index
    %c0_11 = arith.constant 0 : index
    %c0_12 = arith.constant 0 : index
    %14 = vector.load %arg6[%c0_10, %c0_11, %c0_12] : memref<1x8x128xf32, #tpu.memory_space<vmem>>, vector<1x8x128xf32>
    %15 = vector.shape_cast %14 : vector<1x8x128xf32> to vector<8x128xf32>
    %16 = vector.shape_cast %13 : vector<8x128xf32> to vector<1x8x128xf32>
    tpu.vector_store %arg6[%c0_10, %c0_11, %c0_12], %16 {strides = array<i32>} : memref<1x8x128xf32, #tpu.memory_space<vmem>>, vector<1x8x128xf32>,
    return
  }
  func.func @transform_0(%arg0: i32, %arg1: i32, %arg2: i32) -> (i32, i32) {
    %c1_i32 = arith.constant 1 : i32
    %0 = arith.muli %arg0, %c1_i32 : i32
    %1 = arith.addi %0, %arg2 : i32
    %c0_i32 = arith.constant 0 : i32
    %c0_i32_0 = arith.constant 0 : i32
    return %c0_i32, %1 : i32, i32
  }
  func.func @transform_1(%arg0: i32, %arg1: i32, %arg2: i32) -> (i32, i32) {
    %c1_i32 = arith.constant 1 : i32
    %0 = arith.muli %arg0, %c1_i32 : i32
    %1 = arith.addi %0, %arg2 : i32
    %c0_i32 = arith.constant 0 : i32
    return %1, %arg1 : i32, i32
  }
  func.func @transform_2(%arg0: i32, %arg1: i32, %arg2: i32) -> (i32, i32) {
    %c0_i32 = arith.constant 0 : i32
    %c0_i32_0 = arith.constant 0 : i32
    return %c0_i32, %arg1 : i32, i32
  }
  func.func @transform_3(%arg0: i32, %arg1: i32, %arg2: i32) -> (i32, i32, i32) {
    %c0_i32 = arith.constant 0 : i32
    %c0_i32_0 = arith.constant 0 : i32
    return %arg0, %c0_i32, %arg1 : i32, i32, i32
  }
}

</mosaic_0001>

<llo_original>
// kernel: linear_embed.1
$region0: #{linear_embed.1}
  #allocation0 [shape = 'u32[]', space=smem, size = 0x4, offset = 0x4, fixed_abs, tag = 'smem constant byte address 0x4 - core index']
  #allocation1 [shape = 'u32[72,128]{1,0:T(1,128)}', space=vmem, size = 0x9000, scoped, tag = 'internal scratch']
  %s0 = inlined_call_operand.vmem [shape: bf16[8,1024], index: 0, kind: input, shape index: {}]
  %s1 = inlined_call_operand.hbm [shape: bf16[1024,128], index: 1, kind: input, shape index: {}]
  %s2 = inlined_call_operand.vmem [shape: f32[1,128], index: 2, kind: input, shape index: {}]
  %s3 = inlined_call_operand.vmem [shape: f32[1,8,128], index: 3, kind: output, shape index: {}]
  %s4 = sld [smem:[#allocation0]]
  $region34: #{linear_embed.1} parent=0
    _
  %s6 = ssub.s32 1, %s4
  %s7 = scalar_select 0, %s6, %s4
  $region1: #{linear_embed.1} parent=0
    #allocation2 [shape = 'u8[262144]{0}', space=vmem, size = 0x40000, scoped, tag = 'input window, operand 1, single buffered']
    #allocation3 [shape = 's32[1]{0}', space=sflag, size = 0x4, scoped, tag = 'scoped memory for linear_embed.1']
    %8 = vsyncpa [#allocation3], 0
    // Predicated region
    $region2: #{linear_embed.1} parent=1 // pred_check
      _
    $region3: #{linear_embed.1} parent=1 // pred_check_branch
      %10 = sbr.rel (0) target = $region5
    $region4: #{linear_embed.1} parent=1 // pred_region
      %s11 = sadd.s32 0, 0
      %s12 = smul.u32 8, %s11
      %p13 = scmp.lt.s32.totalorder %s12, 7
      %s14 = scalar_select %p13, %s12, 7
      %s15 = smul.addr %s14, 4
      %s16 = scalar_lea.vmem %s0, %s15
      %s17 = sadd.s32 0, 0
      %s18 = smul.u32 8, %s17
    $region5: #{linear_embed.1} parent=1 // pred_fallthru
      _
    // Predicated region
    $region6: #{linear_embed.1} parent=1 // pred_check
      _
    $region7: #{linear_embed.1} parent=1 // pred_check_branch
      %20 = sbr.rel (0) target = $region9
    $region8: #{linear_embed.1} parent=1 // pred_region
      %s21 = sadd.s32 0, 0
      %s22 = smul.u32 128, %s21
      %24 = vsyncadd [#allocation3], 0
      %s25 = smul.addr %s22, 4
      %s26 = scalar_lea.hbm %s1, %s25
      %s27 = sshll.u32 %s26, 4
      %s28 = int_to_ptr.hbm [resolvable:$true] %s27
      %s29 = sshll.u32 [#allocation2], 4
      %s30 = int_to_ptr.vmem [resolvable:$true] %s29
      %35 = dma.hbm_to_vmem [thread:$0]  %s28, 8192, %s30, [#allocation3], 64, 64, 4
    $region9: #{linear_embed.1} parent=1 // pred_fallthru
      _
    // Predicated region
    $region10: #{linear_embed.1} parent=1 // pred_check
      _
    $region11: #{linear_embed.1} parent=1 // pred_check_branch
      %37 = sbr.rel (0) target = $region13
    $region12: #{linear_embed.1} parent=1 // pred_region
      _
    $region13: #{linear_embed.1} parent=1 // pred_fallthru
      _
    // Predicated region
    $region14: #{linear_embed.1} parent=1 // pred_check
      _
    $region15: #{linear_embed.1} parent=1 // pred_check_branch
      %39 = sbr.rel (0) target = $region17
    $region16: #{linear_embed.1} parent=1 // pred_region
      %41 = dma.done [#allocation3], 8192
    $region17: #{linear_embed.1} parent=1 // pred_fallthru
      _
    %s42 = sadd.s32 0, 0
    %s43 = smul.u32 8, %s42
    %p44 = scmp.lt.s32.totalorder %s43, 7
    %s45 = scalar_select %p44, %s43, 7
    %s46 = smul.addr %s45, 4
    %s47 = scalar_lea.vmem %s0, %s46
    %s48 = sadd.s32 0, 0
    %s49 = smul.u32 8, %s48
    %p50 = scmp.lt.s32.totalorder %s49, 7
    %s51 = scalar_select %p50, %s49, 7
    %s52 = smul.addr %s51, 4
    %s53 = scalar_lea.vmem %s0, %s52
    %s54 = sadd.s32 0, 0
    %s55 = smul.u32 8, %s54
    %s56 = sadd.s32 0, 0
    %s57 = smul.u32 128, %s56
    %p58 = scmp.eq.s32.totalorder 0, 0
    // Predicated region
    $region18: #{linear_embed.1} parent=1 // pred_check
      %p59 = pneg %p58
    $region19: #{linear_embed.1} parent=1 // pred_check_branch
      %61 = sbr.rel (%p59) target = $region21
    $region20: #{linear_embed.1} parent=1 // pred_region
      %62 = vst [vmem:[%s3] sm:$0xff] 0.0
    $region21: #{linear_embed.1} parent=1 // pred_fallthru
      _
    %p63 = scmp.eq.s32.totalorder 0, 0
    %p64 = pnand %p58, %p63
    %p65 = pneg %p64
    // Predicated region
    $region22: #{linear_embed.1} parent=1 // pred_check
      _
    $region23: #{linear_embed.1} parent=1 // pred_check_branch
      %67 = sbr.rel (%p64) target = $region25
    $region24: #{linear_embed.1} parent=1 // pred_region
      %v68 = vld [vmem:[%s2] sm:$0x1]
      %v70 = vperm.slane %v68, 0
      %72 = vst [vmem:[%s3] sm:$0xff] %v70
    $region25: #{linear_embed.1} parent=1 // pred_fallthru
      _
    %v73 = vld [vmem:[%s3] sm:$0xff]
    %v74 = vld [vmem:[%s53] sm:$0xff]
    %v75 = vld [vmem:[%s53 + $0x8] sm:$0xff]
    %v76 = vld [vmem:[%s53 + $0x10] sm:$0xff]
    %v77 = vld [vmem:[%s53 + $0x18] sm:$0xff]
    %v78 = vld [vmem:[#allocation2] sm:$0xf]
    %v79 = vld [vmem:[#allocation2 + $0x4] sm:$0xf]
    %v80 = vld [vmem:[#allocation2 + $0x8] sm:$0xf]
    %v81 = vld [vmem:[#allocation2 + $0xc] sm:$0xf]
    %v82 = vld [vmem:[#allocation2 + $0x10] sm:$0xf]
    %v83 = vld [vmem:[#allocation2 + $0x14] sm:$0xf]
    %v84 = vld [vmem:[#allocation2 + $0x18] sm:$0xf]
    %v85 = vld [vmem:[#allocation2 + $0x1c] sm:$0xf]
    %v86 = vld [vmem:[#allocation2 + $0x20] sm:$0xf]
    %v87 = vld [vmem:[#allocation2 + $0x24] sm:$0xf]
    %v88 = vld [vmem:[#allocation2 + $0x28] sm:$0xf]
    %v89 = vld [vmem:[#allocation2 + $0x2c] sm:$0xf]
    %v90 = vld [vmem:[#allocation2 + $0x30] sm:$0xf]
    %v91 = vld [vmem:[#allocation2 + $0x34] sm:$0xf]
    %v92 = vld [vmem:[#allocation2 + $0x38] sm:$0xf]
    %v93 = vld [vmem:[#allocation2 + $0x3c] sm:$0xf]
    %v94 = vld [vmem:[#allocation2 + $0x40] sm:$0xf]
    %v95 = vld [vmem:[#allocation2 + $0x44] sm:$0xf]
    %v96 = vld [vmem:[#allocation2 + $0x48] sm:$0xf]
    %v97 = vld [vmem:[#allocation2 + $0x4c] sm:$0xf]
    %v98 = vld [vmem:[#allocation2 + $0x50] sm:$0xf]
    %v99 = vld [vmem:[#allocation2 + $0x54] sm:$0xf]
    %v100 = vld [vmem:[#allocation2 + $0x58] sm:$0xf]
    %v101 = vld [vmem:[#allocation2 + $0x5c] sm:$0xf]
    %v102 = vld [vmem:[#allocation2 + $0x60] sm:$0xf]
    %v103 = vld [vmem:[#allocation2 + $0x64] sm:$0xf]
    %v104 = vld [vmem:[#allocation2 + $0x68] sm:$0xf]
    %v105 = vld [vmem:[#allocation2 + $0x6c] sm:$0xf]
    %v106 = vld [vmem:[#allocation2 + $0x70] sm:$0xf]
    %v107 = vld [vmem:[#allocation2 + $0x74] sm:$0xf]
    %v108 = vld [vmem:[#allocation2 + $0x78] sm:$0xf]
    %v109 = vld [vmem:[#allocation2 + $0x7c] sm:$0xf]
    %v110 = vld [vmem:[#allocation2 + $0x80] sm:$0xf]
    %v111 = vld [vmem:[#allocation2 + $0x84] sm:$0xf]
    %v112 = vld [vmem:[#allocation2 + $0x88] sm:$0xf]
    %v113 = vld [vmem:[#allocation2 + $0x8c] sm:$0xf]
    %v114 = vld [vmem:[#allocation2 + $0x90] sm:$0xf]
    %v115 = vld [vmem:[#allocation2 + $0x94] sm:$0xf]
    %v116 = vld [vmem:[#allocation2 + $0x98] sm:$0xf]
    %v117 = vld [vmem:[#allocation2 + $0x9c] sm:$0xf]
    %v118 = vld [vmem:[#allocation2 + $0xa0] sm:$0xf]
    %v119 = vld [vmem:[#allocation2 + $0xa4] sm:$0xf]
    %v120 = vld [vmem:[#allocation2 + $0xa8] sm:$0xf]
    %v121 = vld [vmem:[#allocation2 + $0xac] sm:$0xf]
    %v122 = vld [vmem:[#allocation2 + $0xb0] sm:$0xf]
    %v123 = vld [vmem:[#allocation2 + $0xb4] sm:$0xf]
    %v124 = vld [vmem:[#allocation2 + $0xb8] sm:$0xf]
    %v125 = vld [vmem:[#allocation2 + $0xbc] sm:$0xf]
    %v126 = vld [vmem:[#allocation2 + $0xc0] sm:$0xf]
    %v127 = vld [vmem:[#allocation2 + $0xc4] sm:$0xf]
    %v128 = vld [vmem:[#allocation2 + $0xc8] sm:$0xf]
    %v129 = vld [vmem:[#allocation2 + $0xcc] sm:$0xf]
    %v130 = vld [vmem:[#allocation2 + $0xd0] sm:$0xf]
    %v131 = vld [vmem:[#allocation2 + $0xd4] sm:$0xf]
    %v132 = vld [vmem:[#allocation2 + $0xd8] sm:$0xf]
    %v133 = vld [vmem:[#allocation2 + $0xdc] sm:$0xf]
    %v134 = vld [vmem:[#allocation2 + $0xe0] sm:$0xf]
    %v135 = vld [vmem:[#allocation2 + $0xe4] sm:$0xf]
    %v136 = vld [vmem:[#allocation2 + $0xe8] sm:$0xf]
    %v137 = vld [vmem:[#allocation2 + $0xec] sm:$0xf]
    %v138 = vld [vmem:[#allocation2 + $0xf0] sm:$0xf]
    %v139 = vld [vmem:[#allocation2 + $0xf4] sm:$0xf]
    %v140 = vld [vmem:[#allocation2 + $0xf8] sm:$0xf]
    %v141 = vld [vmem:[#allocation2 + $0xfc] sm:$0xf]
    %v142 = vld [vmem:[#allocation2 + $0x100] sm:$0xf]
    %v143 = vld [vmem:[#allocation2 + $0x104] sm:$0xf]
    %v144 = vld [vmem:[#allocation2 + $0x108] sm:$0xf]
    %v145 = vld [vmem:[#allocation2 + $0x10c] sm:$0xf]
    %v146 = vld [vmem:[#allocation2 + $0x110] sm:$0xf]
    %v147 = vld [vmem:[#allocation2 + $0x114] sm:$0xf]
    %v148 = vld [vmem:[#allocation2 + $0x118] sm:$0xf]
    %v149 = vld [vmem:[#allocation2 + $0x11c] sm:$0xf]
    %v150 = vld [vmem:[#allocation2 + $0x120] sm:$0xf]
    %v151 = vld [vmem:[#allocation2 + $0x124] sm:$0xf]
    %v152 = vld [vmem:[#allocation2 + $0x128] sm:$0xf]
    %v153 = vld [vmem:[#allocation2 + $0x12c] sm:$0xf]
    %v154 = vld [vmem:[#allocation2 + $0x130] sm:$0xf]
    %v155 = vld [vmem:[#allocation2 + $0x134] sm:$0xf]
    %v156 = vld [vmem:[#allocation2 + $0x138] sm:$0xf]
    %v157 = vld [vmem:[#allocation2 + $0x13c] sm:$0xf]
    %v158 = vld [vmem:[#allocation2 + $0x140] sm:$0xf]
    %v159 = vld [vmem:[#allocation2 + $0x144] sm:$0xf]
    %v160 = vld [vmem:[#allocation2 + $0x148] sm:$0xf]
    %v161 = vld [vmem:[#allocation2 + $0x14c] sm:$0xf]
    %v162 = vld [vmem:[#allocation2 + $0x150] sm:$0xf]
    %v163 = vld [vmem:[#allocation2 + $0x154] sm:$0xf]
    %v164 = vld [vmem:[#allocation2 + $0x158] sm:$0xf]
    %v165 = vld [vmem:[#allocation2 + $0x15c] sm:$0xf]
    %v166 = vld [vmem:[#allocation2 + $0x160] sm:$0xf]
    %v167 = vld [vmem:[#allocation2 + $0x164] sm:$0xf]
    %v168 = vld [vmem:[#allocation2 + $0x168] sm:$0xf]
    %v169 = vld [vmem:[#allocation2 + $0x16c] sm:$0xf]
    %v170 = vld [vmem:[#allocation2 + $0x170] sm:$0xf]
    %v171 = vld [vmem:[#allocation2 + $0x174] sm:$0xf]
    %v172 = vld [vmem:[#allocation2 + $0x178] sm:$0xf]
    %v173 = vld [vmem:[#allocation2 + $0x17c] sm:$0xf]
    %v174 = vld [vmem:[#allocation2 + $0x180] sm:$0xf]
    %v175 = vld [vmem:[#allocation2 + $0x184] sm:$0xf]
    %v176 = vld [vmem:[#allocation2 + $0x188] sm:$0xf]
    %v177 = vld [vmem:[#allocation2 + $0x18c] sm:$0xf]
    %v178 = vld [vmem:[#allocation2 + $0x190] sm:$0xf]
    %v179 = vld [vmem:[#allocation2 + $0x194] sm:$0xf]
    %v180 = vld [vmem:[#allocation2 + $0x198] sm:$0xf]
    %v181 = vld [vmem:[#allocation2 + $0x19c] sm:$0xf]
    %v182 = vld [vmem:[#allocation2 + $0x1a0] sm:$0xf]
    %v183 = vld [vmem:[#allocation2 + $0x1a4] sm:$0xf]
    %v184 = vld [vmem:[#allocation2 + $0x1a8] sm:$0xf]
    %v185 = vld [vmem:[#allocation2 + $0x1ac] sm:$0xf]
    %v186 = vld [vmem:[#allocation2 + $0x1b0] sm:$0xf]
    %v187 = vld [vmem:[#allocation2 + $0x1b4] sm:$0xf]
    %v188 = vld [vmem:[#allocation2 + $0x1b8] sm:$0xf]
    %v189 = vld [vmem:[#allocation2 + $0x1bc] sm:$0xf]
    %v190 = vld [vmem:[#allocation2 + $0x1c0] sm:$0xf]
    %v191 = vld [vmem:[#allocation2 + $0x1c4] sm:$0xf]
    %v192 = vld [vmem:[#allocation2 + $0x1c8] sm:$0xf]
    %v193 = vld [vmem:[#allocation2 + $0x1cc] sm:$0xf]
    %v194 = vld [vmem:[#allocation2 + $0x1d0] sm:$0xf]
    %v195 = vld [vmem:[#allocation2 + $0x1d4] sm:$0xf]
    %v196 = vld [vmem:[#allocation2 + $0x1d8] sm:$0xf]
    %v197 = vld [vmem:[#allocation2 + $0x1dc] sm:$0xf]
    %v198 = vld [vmem:[#allocation2 + $0x1e0] sm:$0xf]
    %v199 = vld [vmem:[#allocation2 + $0x1e4] sm:$0xf]
    %v200 = vld [vmem:[#allocation2 + $0x1e8] sm:$0xf]
    %v201 = vld [vmem:[#allocation2 + $0x1ec] sm:$0xf]
    %v202 = vld [vmem:[#allocation2 + $0x1f0] sm:$0xf]
    %v203 = vld [vmem:[#allocation2 + $0x1f4] sm:$0xf]
    %v204 = vld [vmem:[#allocation2 + $0x1f8] sm:$0xf]
    %v205 = vld [vmem:[#allocation2 + $0x1fc] sm:$0xf]
    %v210 = vunpack.c.l.b16 %v74
    %v211 = vunpack.c.h.b16 %v74
    %v212 = vunpack.c.l.b16 %v75
    %v213 = vunpack.c.h.b16 %v75
    %v214 = vunpack.c.l.b16 %v76
    %v215 = vunpack.c.h.b16 %v76
    %v216 = vunpack.c.l.b16 %v77
    %v217 = vunpack.c.h.b16 %v77
    %v218 = vpack.c.b16 %v210, %v210
    %v219 = vpack.c.b16 %v211, %v211
    %v220 = vpack.c.b16 %v212, %v212
    %v221 = vpack.c.b16 %v213, %v213
    %v222 = vpack.c.b16 %v214, %v214
    %v223 = vpack.c.b16 %v215, %v215
    %v224 = vpack.c.b16 %v216, %v216
    %v225 = vpack.c.b16 %v217, %v217
    %v362 = vunpack.c.l.b16 %v78
    %v363 = vunpack.c.l.b16 %v79
    %v364 = vunpack.c.l.b16 %v80
    %v365 = vunpack.c.l.b16 %v81
    %v366 = vunpack.c.l.b16 %v82
    %v367 = vunpack.c.l.b16 %v83
    %v368 = vunpack.c.l.b16 %v84
    %v369 = vunpack.c.l.b16 %v85
    %v370 = vunpack.c.l.b16 %v86
    %v371 = vunpack.c.l.b16 %v87
    %v372 = vunpack.c.l.b16 %v88
    %v373 = vunpack.c.l.b16 %v89
    %v374 = vunpack.c.l.b16 %v90
    %v375 = vunpack.c.l.b16 %v91
    %v376 = vunpack.c.l.b16 %v92
    %v377 = vunpack.c.l.b16 %v93
    %v378 = vunpack.c.l.b16 %v94
    %v379 = vunpack.c.l.b16 %v95
    %v380 = vunpack.c.l.b16 %v96
    %v381 = vunpack.c.l.b16 %v97
    %v382 = vunpack.c.l.b16 %v98
    %v383 = vunpack.c.l.b16 %v99
    %v384 = vunpack.c.l.b16 %v100
    %v385 = vunpack.c.l.b16 %v101
    %v386 = vunpack.c.l.b16 %v102
    %v387 = vunpack.c.l.b16 %v103
    %v388 = vunpack.c.l.b16 %v104
    %v389 = vunpack.c.l.b16 %v105
    %v390 = vunpack.c.l.b16 %v106
    %v391 = vunpack.c.l.b16 %v107
    %v392 = vunpack.c.l.b16 %v108
    %v393 = vunpack.c.l.b16 %v109
    %v394 = vunpack.c.l.b16 %v110
    %v395 = vunpack.c.l.b16 %v111
    %v396 = vunpack.c.l.b16 %v112
    %v397 = vunpack.c.l.b16 %v113
    %v398 = vunpack.c.l.b16 %v114
    %v399 = vunpack.c.l.b16 %v115
    %v400 = vunpack.c.l.b16 %v116
    %v401 = vunpack.c.l.b16 %v117
    %v402 = vunpack.c.l.b16 %v118
    %v403 = vunpack.c.l.b16 %v119
    %v404 = vunpack.c.l.b16 %v120
    %v405 = vunpack.c.l.b16 %v121
    %v406 = vunpack.c.l.b16 %v122
    %v407 = vunpack.c.l.b16 %v123
    %v408 = vunpack.c.l.b16 %v124
    %v409 = vunpack.c.l.b16 %v125
    %v410 = vunpack.c.l.b16 %v126
    %v411 = vunpack.c.l.b16 %v127
    %v412 = vunpack.c.l.b16 %v128
    %v413 = vunpack.c.l.b16 %v129
    %v414 = vunpack.c.l.b16 %v130
    %v415 = vunpack.c.l.b16 %v131
    %v416 = vunpack.c.l.b16 %v132
    %v417 = vunpack.c.l.b16 %v133
    %v418 = vunpack.c.l.b16 %v134
    %v419 = vunpack.c.l.b16 %v135
    %v420 = vunpack.c.l.b16 %v136
    %v421 = vunpack.c.l.b16 %v137
    %v422 = vunpack.c.l.b16 %v138
    %v423 = vunpack.c.l.b16 %v139
    %v424 = vunpack.c.l.b16 %v140
    %v425 = vunpack.c.l.b16 %v141
    %v426 = vunpack.c.l.b16 %v142
    %v427 = vunpack.c.l.b16 %v143
    %v428 = vunpack.c.l.b16 %v144
    %v429 = vunpack.c.l.b16 %v145
    %v430 = vunpack.c.l.b16 %v146
    %v431 = vunpack.c.l.b16 %v147
    %v432 = vunpack.c.l.b16 %v148
    %v433 = vunpack.c.l.b16 %v149
    %v434 = vunpack.c.l.b16 %v150
    %v435 = vunpack.c.l.b16 %v151
    %v436 = vunpack.c.l.b16 %v152
    %v437 = vunpack.c.l.b16 %v153
    %v438 = vunpack.c.l.b16 %v154
    %v439 = vunpack.c.l.b16 %v155
    %v440 = vunpack.c.l.b16 %v156
    %v441 = vunpack.c.l.b16 %v157
    %v442 = vunpack.c.l.b16 %v158
    %v443 = vunpack.c.l.b16 %v159
    %v444 = vunpack.c.l.b16 %v160
    %v445 = vunpack.c.l.b16 %v161
    %v446 = vunpack.c.l.b16 %v162
    %v447 = vunpack.c.l.b16 %v163
    %v448 = vunpack.c.l.b16 %v164
    %v449 = vunpack.c.l.b16 %v165
    %v450 = vunpack.c.l.b16 %v166
    %v451 = vunpack.c.l.b16 %v167
    %v452 = vunpack.c.l.b16 %v168
    %v453 = vunpack.c.l.b16 %v169
    %v454 = vunpack.c.l.b16 %v170
    %v455 = vunpack.c.l.b16 %v171
    %v456 = vunpack.c.l.b16 %v172
    %v457 = vunpack.c.l.b16 %v173
    %v458 = vunpack.c.l.b16 %v174
    %v459 = vunpack.c.l.b16 %v175
    %v460 = vunpack.c.l.b16 %v176
    %v461 = vunpack.c.l.b16 %v177
    %v462 = vunpack.c.l.b16 %v178
    %v463 = vunpack.c.l.b16 %v179
    %v464 = vunpack.c.l.b16 %v180
    %v465 = vunpack.c.l.b16 %v181
    %v466 = vunpack.c.l.b16 %v182
    %v467 = vunpack.c.l.b16 %v183
    %v468 = vunpack.c.l.b16 %v184
    %v469 = vunpack.c.l.b16 %v185
    %v470 = vunpack.c.l.b16 %v186
    %v471 = vunpack.c.l.b16 %v187
    %v472 = vunpack.c.l.b16 %v188
    %v473 = vunpack.c.l.b16 %v189
    %v474 = vunpack.c.l.b16 %v190
    %v475 = vunpack.c.l.b16 %v191
    %v476 = vunpack.c.l.b16 %v192
    %v477 = vunpack.c.l.b16 %v193
    %v478 = vunpack.c.l.b16 %v194
    %v479 = vunpack.c.l.b16 %v195
    %v480 = vunpack.c.l.b16 %v196
    %v481 = vunpack.c.l.b16 %v197
    %v482 = vunpack.c.l.b16 %v198
    %v483 = vunpack.c.l.b16 %v199
    %v484 = vunpack.c.l.b16 %v200
    %v485 = vunpack.c.l.b16 %v201
    %v486 = vunpack.c.l.b16 %v202
    %v487 = vunpack.c.l.b16 %v203
    %v488 = vunpack.c.l.b16 %v204
    %v489 = vunpack.c.l.b16 %v205
    %v490 = vpack.c.b16 %v363, %v362
    %v491 = vpack.c.b16 %v365, %v364
    %v492 = vpack.c.b16 %v367, %v366
    %v493 = vpack.c.b16 %v369, %v368
    %v494 = vpack.c.b16 %v371, %v370
    %v495 = vpack.c.b16 %v373, %v372
    %v496 = vpack.c.b16 %v375, %v374
    %v497 = vpack.c.b16 %v377, %v376
    %v498 = vpack.c.b16 %v379, %v378
    %v499 = vpack.c.b16 %v381, %v380
    %v500 = vpack.c.b16 %v383, %v382
    %v501 = vpack.c.b16 %v385, %v384
    %v502 = vpack.c.b16 %v387, %v386
    %v503 = vpack.c.b16 %v389, %v388
    %v504 = vpack.c.b16 %v391, %v390
    %v505 = vpack.c.b16 %v393, %v392
    %v506 = vpack.c.b16 %v395, %v394
    %v507 = vpack.c.b16 %v397, %v396
    %v508 = vpack.c.b16 %v399, %v398
    %v509 = vpack.c.b16 %v401, %v400
    %v510 = vpack.c.b16 %v403, %v402
    %v511 = vpack.c.b16 %v405, %v404
    %v512 = vpack.c.b16 %v407, %v406
    %v513 = vpack.c.b16 %v409, %v408
    %v514 = vpack.c.b16 %v411, %v410
    %v515 = vpack.c.b16 %v413, %v412
    %v516 = vpack.c.b16 %v415, %v414
    %v517 = vpack.c.b16 %v417, %v416
    %v518 = vpack.c.b16 %v419, %v418
    %v519 = vpack.c.b16 %v421, %v420
    %v520 = vpack.c.b16 %v423, %v422
    %v521 = vpack.c.b16 %v425, %v424
    %v522 = vpack.c.b16 %v427, %v426
    %v523 = vpack.c.b16 %v429, %v428
    %v524 = vpack.c.b16 %v431, %v430
    %v525 = vpack.c.b16 %v433, %v432
    %v526 = vpack.c.b16 %v435, %v434
    %v527 = vpack.c.b16 %v437, %v436
    %v528 = vpack.c.b16 %v439, %v438
    %v529 = vpack.c.b16 %v441, %v440
    %v530 = vpack.c.b16 %v443, %v442
    %v531 = vpack.c.b16 %v445, %v444
    %v532 = vpack.c.b16 %v447, %v446
    %v533 = vpack.c.b16 %v449, %v448
    %v534 = vpack.c.b16 %v451, %v450
    %v535 = vpack.c.b16 %v453, %v452
    %v536 = vpack.c.b16 %v455, %v454
    %v537 = vpack.c.b16 %v457, %v456
    %v538 = vpack.c.b16 %v459, %v458
    %v539 = vpack.c.b16 %v461, %v460
    %v540 = vpack.c.b16 %v463, %v462
    %v541 = vpack.c.b16 %v465, %v464
    %v542 = vpack.c.b16 %v467, %v466
    %v543 = vpack.c.b16 %v469, %v468
    %v544 = vpack.c.b16 %v471, %v470
    %v545 = vpack.c.b16 %v473, %v472
    %v546 = vpack.c.b16 %v475, %v474
    %v547 = vpack.c.b16 %v477, %v476
    %v548 = vpack.c.b16 %v479, %v478
    %v549 = vpack.c.b16 %v481, %v480
    %v550 = vpack.c.b16 %v483, %v482
    %v551 = vpack.c.b16 %v485, %v484
    %v552 = vpack.c.b16 %v487, %v486
    %v553 = vpack.c.b16 %v489, %v488
    %618 = vmatpush.bf16.msra.mxu0 %v497
    %619 = vmatpush.bf16.msra.mxu0 %v496
    %620 = vmatpush.bf16.msra.mxu0 %v495
    %621 = vmatpush.bf16.msra.mxu0 %v494
    %622 = vmatpush.bf16.msra.mxu0 %v493
    %623 = vmatpush.bf16.msra.mxu0 %v492
    %624 = vmatpush.bf16.msra.mxu0 %v491
    %625 = vmatpush.bf16.msra.mxu0 %v490
    %626 = vmatmul.bf16.gmra.mxu0 %v218
    %v627 = vpop.f32.mrf.mxu0
    %v628 = vadd.f32 0.0, %v627
    %v629 = vpop.f32.mrf.mxu0
    %630 = vdwg.mxu0
    %631 = vmatpush.bf16.msra.mxu0 %v505
    %632 = vmatpush.bf16.msra.mxu0 %v504
    %633 = vmatpush.bf16.msra.mxu0 %v503
    %634 = vmatpush.bf16.msra.mxu0 %v502
    %635 = vmatpush.bf16.msra.mxu0 %v501
    %636 = vmatpush.bf16.msra.mxu0 %v500
    %637 = vmatpush.bf16.msra.mxu0 %v499
    %638 = vmatpush.bf16.msra.mxu0 %v498
    %639 = vmatmul.bf16.gmra.mxu0 %v219
    %v640 = vpop.f32.mrf.mxu0
    %v641 = vadd.f32 %v628, %v640
    %v642 = vpop.f32.mrf.mxu0
    %643 = vdwg.mxu0
    %644 = vmatpush.bf16.msra.mxu0 %v513
    %645 = vmatpush.bf16.msra.mxu0 %v512
    %646 = vmatpush.bf16.msra.mxu0 %v511
    %647 = vmatpush.bf16.msra.mxu0 %v510
    %648 = vmatpush.bf16.msra.mxu0 %v509
    %649 = vmatpush.bf16.msra.mxu0 %v508
    %650 = vmatpush.bf16.msra.mxu0 %v507
    %651 = vmatpush.bf16.msra.mxu0 %v506
    %652 = vmatmul.bf16.gmra.mxu0 %v220
    %v653 = vpop.f32.mrf.mxu0
    %v654 = vadd.f32 %v641, %v653
    %v655 = vpop.f32.mrf.mxu0
    %656 = vdwg.mxu0
    %657 = vmatpush.bf16.msra.mxu0 %v521
    %658 = vmatpush.bf16.msra.mxu0 %v520
    %659 = vmatpush.bf16.msra.mxu0 %v519
    %660 = vmatpush.bf16.msra.mxu0 %v518
    %661 = vmatpush.bf16.msra.mxu0 %v517
    %662 = vmatpush.bf16.msra.mxu0 %v516
    %663 = vmatpush.bf16.msra.mxu0 %v515
    %664 = vmatpush.bf16.msra.mxu0 %v514
    %665 = vmatmul.bf16.gmra.mxu0 %v221
    %v666 = vpop.f32.mrf.mxu0
    %v667 = vadd.f32 %v654, %v666
    %v668 = vpop.f32.mrf.mxu0
    %669 = vdwg.mxu0
    %670 = vmatpush.bf16.msra.mxu0 %v529
    %671 = vmatpush.bf16.msra.mxu0 %v528
    %672 = vmatpush.bf16.msra.mxu0 %v527
    %673 = vmatpush.bf16.msra.mxu0 %v526
    %674 = vmatpush.bf16.msra.mxu0 %v525
    %675 = vmatpush.bf16.msra.mxu0 %v524
    %676 = vmatpush.bf16.msra.mxu0 %v523
    %677 = vmatpush.bf16.msra.mxu0 %v522
    %678 = vmatmul.bf16.gmra.mxu0 %v222
    %v679 = vpop.f32.mrf.mxu0
    %v680 = vadd.f32 %v667, %v679
    %v681 = vpop.f32.mrf.mxu0
    %682 = vdwg.mxu0
    %683 = vmatpush.bf16.msra.mxu0 %v537
    %684 = vmatpush.bf16.msra.mxu0 %v536
    %685 = vmatpush.bf16.msra.mxu0 %v535
    %686 = vmatpush.bf16.msra.mxu0 %v534
    %687 = vmatpush.bf16.msra.mxu0 %v533
    %688 = vmatpush.bf16.msra.mxu0 %v532
    %689 = vmatpush.bf16.msra.mxu0 %v531
    %690 = vmatpush.bf16.msra.mxu0 %v530
    %691 = vmatmul.bf16.gmra.mxu0 %v223
    %v692 = vpop.f32.mrf.mxu0
    %v693 = vadd.f32 %v680, %v692
    %v694 = vpop.f32.mrf.mxu0
    %695 = vdwg.mxu0
    %696 = vmatpush.bf16.msra.mxu0 %v545
    %697 = vmatpush.bf16.msra.mxu0 %v544
    %698 = vmatpush.bf16.msra.mxu0 %v543
    %699 = vmatpush.bf16.msra.mxu0 %v542
    %700 = vmatpush.bf16.msra.mxu0 %v541
    %701 = vmatpush.bf16.msra.mxu0 %v540
    %702 = vmatpush.bf16.msra.mxu0 %v539
    %703 = vmatpush.bf16.msra.mxu0 %v538
    %704 = vmatmul.bf16.gmra.mxu0 %v224
    %v705 = vpop.f32.mrf.mxu0
    %v706 = vadd.f32 %v693, %v705
    %v707 = vpop.f32.mrf.mxu0
    %708 = vdwg.mxu0
    %709 = vmatpush.bf16.msra.mxu0 %v553
    %710 = vmatpush.bf16.msra.mxu0 %v552
    %711 = vmatpush.bf16.msra.mxu0 %v551
    %712 = vmatpush.bf16.msra.mxu0 %v550
    %713 = vmatpush.bf16.msra.mxu0 %v549
    %714 = vmatpush.bf16.msra.mxu0 %v548
    %715 = vmatpush.bf16.msra.mxu0 %v547
    %716 = vmatpush.bf16.msra.mxu0 %v546
    %717 = vmatmul.bf16.gmra.mxu0 %v225
    %v718 = vpop.f32.mrf.mxu0
    %v719 = vadd.f32 %v706, %v718
    %v720 = vpop.f32.mrf.mxu0
    %721 = vdwg.mxu0
    %v722 = vadd.f32 %v73, %v719
    %723 = vst [vmem:[%s3] sm:$0xff] %v722
    // Predicated region
    $region26: #{linear_embed.1} parent=1 // pred_check
      _
    $region27: #{linear_embed.1} parent=1 // pred_check_branch
      %725 = sbr.rel (0) target = $region29
    $region28: #{linear_embed.1} parent=1 // pred_region
      _
    $region29: #{linear_embed.1} parent=1 // pred_fallthru
      _
    // Predicated region
    $region30: #{linear_embed.1} parent=1 // pred_check
      _
    $region31: #{linear_embed.1} parent=1 // pred_check_branch
      %727 = sbr.rel (0) target = $region33
    $region32: #{linear_embed.1} parent=1 // pred_region
      _
    $region33: #{linear_embed.1} parent=1 // pred_fallthru
      _
    %728 = vsyncpa [#allocation3], 1

</llo_original>
